<compile_context>
chip_gen: v5e
topology: v5e:2x2
jax: 0.10.0
libtpu: 0.0.40
codegen_flags: <defaults>
</compile_context>

<pallas_src>
import functools

import jax
import jax.numpy as jnp
import numpy as np
from jax.experimental import pallas as pl
from jax.experimental.pallas import tpu as pltpu

_OUT_PAD = 128  # lane-dense padded logit width (sliced back to num_classes outside)

# ----------------------------- pooling / activation tables -----------------------------
def _avg_pool2(a, b):          # pairwise average; nested twice == 2x2 AvgPool
    return (a + b) * 0.5


def _max_pool2(a, b):          # pairwise max; nested twice == 2x2 MaxPool
    return jnp.maximum(a, b)


_ACTS = [lambda v: jnp.maximum(v, 0.0), jax.nn.sigmoid, jnp.tanh]   # ReLU, Sigmoid, Tanh
_POOLS = [_avg_pool2, _max_pool2]                                   # AvgPool2d, MaxPool2d
_KSIZES = [3, 5, 7, 9]                                              # conv3x3 .. conv9x9


# ----------------------------- constant helper matrices (built once) -------------------
def _conv_masks(H, W, K):
    """(K*K, H*W) 0/1 'same'-padding validity mask per kernel tap, full-resolution grid."""
    pad = K // 2
    h = np.arange(H * W) // W
    w = np.arange(H * W) % W
    rows = []
    for kh in range(K):
        for kw in range(K):
            dh, dw = kh - pad, kw - pad
            rows.append((h + dh >= 0) & (h + dh < H) & (w + dw >= 0) & (w + dw < W))
    return np.stack(rows, 0).astype(np.float32)


def _conv_masks_stride2(H, W, K):
    """conv2 masks on the (H//2, W//2) pooled grid, embedded at home lanes p = 2i*W + 2j of
    the full H*W lane layout (zero at non-home lanes, zero at out-of-grid taps)."""
    pad = K // 2
    Hh, Wh = H // 2, W // 2
    p = np.arange(H * W)
    h, w = p // W, p % W
    is_home = (h % 2 == 0) & (w % 2 == 0)
    i, j = h // 2, w // 2
    rows = []
    for kh in range(K):
        for kw in range(K):
            dh, dw = kh - pad, kw - pad
            valid = (i + dh >= 0) & (i + dh < Hh) & (j + dw >= 0) & (j + dw < Wh)
            rows.append(is_home & valid)
    return np.stack(rows, 0).astype(np.float32)


def _sel_compact(H, W):
    """(H*W, (H//4)*(W//4)) 0/1 selection: picks the double-home lane p = 4a*W + 4b (where
    the twice-pooled value lives) and compacts to the (H//4, W//4) row-major grid."""
    Hq, Wq = H // 4, W // 4
    S = np.zeros((H * W, Hq * Wq), np.float32)
    q = np.arange(Hq * Wq)
    a, b = q // Wq, q % Wq
    S[4 * a * W + 4 * b, q] = 1.0
    return S


def _flatten_mask(C2, Fq):
    """(C2, C2*Fq) block-diagonal 0/1 mask implementing the PyTorch NCHW flatten
    (channel-major, spatial-minor) via lane-tile + mask + sublane-sum."""
    D = np.zeros((C2, C2 * Fq), np.float32)
    for c in range(C2):
        D[c, c * Fq:(c + 1) * Fq] = 1.0
    return D


# ----------------------------- pltpu.roll sign probe -----------------------------------
_ROLL_JNP_LIKE = None


def _roll_is_jnp_like():
    """One-time probe of pltpu.roll's shift convention (jnp.roll-like or mirrored).
    Must be called outside jit once (result is cached)."""
    global _ROLL_JNP_LIKE
    if _ROLL_JNP_LIKE is None:
        def k(x_ref, o_ref):
            o_ref[...] = pltpu.roll(x_ref[...], shift=1, axis=1)

        x = jnp.tile(jnp.arange(128, dtype=jnp.float32)[None, :], (8, 1))
        out = pl.pallas_call(k, out_shape=jax.ShapeDtypeStruct((8, 128), jnp.float32))(x)
        _ROLL_JNP_LIKE = bool(out[0, 0] == 127.0)   # jnp.roll(iota, 1)[0] == 127
    return _ROLL_JNP_LIKE


def _choose_tb(B, max_tb=8):
    """Largest batch tile <= max_tb that divides B while keeping >=2 grid steps
    (so v7x's second TensorCore gets work); VMEM use per tile is ~TB * 0.5 MB."""
    if B <= 1:
        return 1
    for tb in range(min(max_tb, B // 2), 0, -1):
        if B % tb == 0:
            return tb
    return 1


# --------------------------------- fused kernel ----------------------------------------
def _make_kernel(TB, H, W, K1, K2, act1, act2, pool1, pool2, roll_jnp_like):
    S = H * W
    n = TB * S
    pad1, pad2 = K1 // 2, K2 // 2
    offs1 = [dh * W + dw for dh in range(-pad1, pad1 + 1) for dw in range(-pad1, pad1 + 1)]
    # conv2 operates on the un-compacted layout -> doubled tap offsets (home-lane stride 2).
    offs2 = [2 * (dh * W + dw) for dh in range(-pad2, pad2 + 1) for dw in range(-pad2, pad2 + 1)]

    def rolled(v, off):
        # result[p] = v[(p + off) % n]; sign handled per the probed roll convention.
        amt = ((-off) if roll_jnp_like else off) % n
        if amt == 0:
            return v
        return pltpu.roll(v, shift=amt, axis=v.ndim - 1)

    def conv_bn_act_pool(xin_bf16, w_ref, b_ref, m_ref, offs, act, pool, po_col, po_row):
        masks = m_ref[...]                                     # (KK, n) bf16, tiled per image
        # im2col in-register: one row-block per tap; the mask also implements 'same' padding
        # and kills any wrap across image / tile boundaries.
        cols = jnp.concatenate(
            [rolled(xin_bf16, off) * masks[t:t + 1, :] for t, off in enumerate(offs)],
            axis=0)                                            # (KK*Cin, n) bf16
        y = jnp.dot(w_ref[...], cols, preferred_element_type=jnp.float32) + b_ref[...]
        y = act(y)                                             # f32
        # 2x2/2 pooling: combine 4 lane-shifted copies; the pooled value is valid at the
        # "home" lanes (top-left of each 2x2 block) which is all downstream stages read.
        return pool(pool(y, rolled(y, po_col)),
                    pool(rolled(y, po_row), rolled(y, po_row + po_col)))

    def kernel(x_ref, w1m, b1c, m1, w2m, b2c, m2, sel_ref, dmask_ref,
               w1f, b1f, w2f, b2f, w3f, b3f, o_ref):
        x = x_ref[0]                                                        # (Cin, TB*S) bf16
        # conv1 + BN(eval, folded) + act1 + pool1  (valid at home lanes 2i*W + 2j)
        y1 = conv_bn_act_pool(x, w1m, b1c, m1, offs1, act1, pool1, 1, W)    # (C1, n) f32
        # conv2 + BN + act2 + pool2 on the un-compacted layout (valid at 4a*W + 4b)
        y2 = conv_bn_act_pool(y1.astype(jnp.bfloat16), w2m, b2c, m2,
                              offs2, act2, pool2, 2, 2 * W)                 # (C2, n) f32
        C2 = y2.shape[0]

        sel = sel_ref[...]                                                  # (S, Fq) bf16
        dmask = dmask_ref[...]                                              # (C2, C2*Fq) f32
        rows = []
        for t in range(TB):                                                 # tiny static loop
            yt = y2[:, t * S:(t + 1) * S].astype(jnp.bfloat16)              # (C2, S)
            g = jnp.dot(yt, sel, preferred_element_type=jnp.float32)        # (C2, Fq) compacted
            # NCHW flatten (channel-major) without per-channel concats:
            # lane-tile C2x, keep the block-diagonal, sum over the sublane (channel) dim.
            rows.append(jnp.sum(jnp.tile(g, (1, C2)) * dmask, axis=0, keepdims=True))
        xflat = rows[0] if TB == 1 else jnp.concatenate(rows, axis=0)       # (TB, C2*Fq)

        # TODO(synk): Dropout after fc1/fc2 is identity in eval mode; train-mode random
        # masking is not implemented.
        h1 = jnp.dot(xflat.astype(jnp.bfloat16), w1f[...],
                     preferred_element_type=jnp.float32) + b1f[...]
        h2 = jnp.dot(h1.astype(jnp.bfloat16), w2f[...],
                     preferred_element_type=jnp.float32) + b2f[...]
        o = jnp.dot(h2.astype(jnp.bfloat16), w3f[...],
                    preferred_element_type=jnp.float32) + b3f[...]          # (TB, 128) padded
        o_ref[0] = o.astype(o_ref.dtype)

    return kernel


# --------------------------------- parameters ------------------------------------------
def init_params(key, solution, num_classes=10):
    """Random parameters.

    NOTE: conv weights are stored (KH, KW, Cin, Cout).  Real PyTorch nn.Conv2d weights are
    (Cout, Cin, KH, KW) and must be permuted with transpose(2, 3, 1, 0) before use here.
    fc weights are (out_features, in_features) like nn.Linear.
    """
    c1, c2, f1, f2 = int(solution[0]), int(solution[1]), int(solution[2]), int(solution[3])
    k1, k2 = _KSIZES[int(solution[6])], _KSIZES[int(solution[7])]
    ks = jax.random.split(key, 16)

    def conv_w(k, kh, cin, cout):
        fan_in = cin * kh * kh
        return jax.random.normal(k, (kh, kh, cin, cout), jnp.float32) / jnp.sqrt(fan_in)

    def lin_w(k, out_f, in_f):
        return jax.random.normal(k, (out_f, in_f), jnp.float32) / jnp.sqrt(in_f)

    return dict(
        conv1_w=conv_w(ks[0], k1, 3, c1),
        bn1_gamma=1.0 + 0.1 * jax.random.normal(ks[1], (c1,), jnp.float32),
        bn1_beta=0.1 * jax.random.normal(ks[2], (c1,), jnp.float32),
        bn1_mean=0.1 * jax.random.normal(ks[3], (c1,), jnp.float32),
        bn1_var=jax.random.uniform(ks[4], (c1,), jnp.float32, 0.5, 1.5),
        conv2_w=conv_w(ks[5], k2, c1, c2),
        bn2_gamma=1.0 + 0.1 * jax.random.normal(ks[6], (c2,), jnp.float32),
        bn2_beta=0.1 * jax.random.normal(ks[7], (c2,), jnp.float32),
        bn2_mean=0.1 * jax.random.normal(ks[8], (c2,), jnp.float32),
        bn2_var=jax.random.uniform(ks[9], (c2,), jnp.float32, 0.5, 1.5),
        fc1_w=lin_w(ks[10], f1, 8 * 8 * c2),
        fc1_b=0.1 * jax.random.normal(ks[11], (f1,), jnp.float32),
        fc2_w=lin_w(ks[12], f2, f1),
        fc2_b=0.1 * jax.random.normal(ks[13], (f2,), jnp.float32),
        fc3_w=lin_w(ks[14], num_classes, f2),
        fc3_b=0.1 * jax.random.normal(ks[15], (num_classes,), jnp.float32),
    )


def prepare_params(params, solution, input_hw=(32, 32)):
    """One-time packing: fold eval-mode BN into conv weights/bias, cast matmul operands to
    bf16, pre-transpose fc weights, pad fc3 to 128 lanes, and build the constant im2col
    boundary masks / compaction selection / flatten mask."""
    eps = 1e-5  # PyTorch BatchNorm2d default
    k1, k2 = _KSIZES[int(solution[6])], _KSIZES[int(solution[7])]
    H, W = input_hw
    C2 = params["bn2_gamma"].shape[0]
    num_classes = params["fc3_b"].shape[0]
    assert num_classes <= _OUT_PAD
    Fq = (H // 4) * (W // 4)

    s1 = params["bn1_gamma"] / jnp.sqrt(params["bn1_var"] + eps)
    s2 = params["bn2_gamma"] / jnp.sqrt(params["bn2_var"] + eps)

    def conv_mat(w, scale):
        # (KH, KW, Cin, Cout) -> (Cout, KH*KW*Cin); tap-major, cin-minor row order matches
        # the in-kernel im2col; eval BN scale folded per output channel.
        kh, kw, cin, cout = w.shape
        m = jnp.transpose(w, (3, 0, 1, 2)).reshape(cout, kh * kw * cin) * scale[:, None]
        return m.astype(jnp.bfloat16)

    return dict(
        w1m=conv_mat(params["conv1_w"], s1),
        b1c=(params["bn1_beta"] - params["bn1_mean"] * s1)[:, None].astype(jnp.float32),
        mask1=jnp.asarray(_conv_masks(H, W, k1), jnp.bfloat16),
        w2m=conv_mat(params["conv2_w"], s2),
        b2c=(params["bn2_beta"] - params["bn2_mean"] * s2)[:, None].astype(jnp.float32),
        mask2=jnp.asarray(_conv_masks_stride2(H, W, k2), jnp.bfloat16),
        sel=jnp.asarray(_sel_compact(H, W), jnp.bfloat16),
        dmask=jnp.asarray(_flatten_mask(C2, Fq), jnp.float32),
        w1f=params["fc1_w"].T.astype(jnp.bfloat16),
        b1f=params["fc1_b"][None, :].astype(jnp.float32),
        w2f=params["fc2_w"].T.astype(jnp.bfloat16),
        b2f=params["fc2_b"][None, :].astype(jnp.float32),
        w3f=jnp.pad(params["fc3_w"].T,
                    ((0, 0), (0, _OUT_PAD - num_classes))).astype(jnp.bfloat16),
        b3f=jnp.pad(params["fc3_b"][None, :],
                    ((0, 0), (0, _OUT_PAD - num_classes))).astype(jnp.float32),
    )


# --------------------------------- forward ---------------------------------------------
def lenet5_forward(prep, x_nchw, solution, num_classes=10, block_batch=None):
    B, Cin, H, W = x_nchw.shape
    assert H % 4 == 0 and W % 4 == 0
    TB = block_batch if block_batch is not None else _choose_tb(B)
    assert B % TB == 0
    G = B // TB
    S = H * W

    k1, k2 = _KSIZES[int(solution[6])], _KSIZES[int(solution[7])]
    kernel = _make_kernel(
        TB, H, W, k1, k2,
        _ACTS[int(solution[8])], _ACTS[int(solution[9])],
        _POOLS[int(solution[10])], _POOLS[int(solution[11])],
        _roll_is_jnp_like())

    # Host-side one-pass relayout to the lane-packed tile layout, bf16 (halves HBM traffic).
    xb = x_nchw.astype(jnp.bfloat16).reshape(G, TB, Cin, S)
    xb = xb.transpose(0, 2, 1, 3).reshape(G, Cin, TB * S)

    # Tile the per-image boundary masks across the lane-packed batch tile.
    m1 = jnp.tile(prep["mask1"], (1, TB))
    m2 = jnp.tile(prep["mask2"], (1, TB))

    consts = [prep["w1m"], prep["b1c"], m1, prep["w2m"], prep["b2c"], m2,
              prep["sel"], prep["dmask"], prep["w1f"], prep["b1f"],
              prep["w2f"], prep["b2f"], prep["w3f"], prep["b3f"]]

    def _const_spec(a):
        return pl.BlockSpec(a.shape, lambda i, _n=a.ndim: (0,) * _n)

    out = pl.pallas_call(
        kernel,
        out_shape=jax.ShapeDtypeStruct((G, TB, _OUT_PAD), jnp.float32),
        grid=(G,),
        in_specs=[pl.BlockSpec((1, Cin, TB * S), lambda i: (i, 0, 0))]
                 + [_const_spec(a) for a in consts],
        out_specs=pl.BlockSpec((1, TB, _OUT_PAD), lambda i: (i, 0, 0)),
        compiler_params=pltpu.CompilerParams(
            dimension_semantics=("parallel",),
            vmem_limit_bytes=32 * 1024 * 1024),
    )(xb, *consts)
    return out.reshape(B, _OUT_PAD)[:, :num_classes]


# --------------------------------- pure-JAX reference ------------------------------------
def lenet5_reference(params, x, solution):
    act1, act2 = _ACTS[int(solution[8])], _ACTS[int(solution[9])]
    p1, p2 = int(solution[10]), int(solution[11])
    eps = 1e-5

    def conv(h, w):
        return jax.lax.conv_general_dilated(
            h, w, window_strides=(1, 1), padding="SAME",
            dimension_numbers=("NCHW", "HWIO", "NCHW"))

    def bn(h, g, b, m, v):
        return (h - m[None, :, None, None]) * (
            g[None, :, None, None] / jnp.sqrt(v[None, :, None, None] + eps)
        ) + b[None, :, None, None]

    def pool(h, which):
        b_, c_, hh, ww = h.shape
        hr = h.reshape(b_, c_, hh // 2, 2, ww // 2, 2)
        return hr.mean(axis=(3, 5)) if which == 0 else hr.max(axis=(3, 5))

    h = pool(act1(bn(conv(x, params["conv1_w"]), params["bn1_gamma"],
                     params["bn1_beta"], params["bn1_mean"], params["bn1_var"])), p1)
    h = pool(act2(bn(conv(h, params["conv2_w"]), params["bn2_gamma"],
                     params["bn2_beta"], params["bn2_mean"], params["bn2_var"])), p2)
    h = h.reshape(h.shape[0], -1)
    h = h @ params["fc1_w"].T + params["fc1_b"]
    h = h @ params["fc2_w"].T + params["fc2_b"]
    return h @ params["fc3_w"].T + params["fc3_b"]


if __name__ == "__main__":
    # solution = [C1, C2, FC1, FC2, p_drop1, p_drop2, conv1_k, conv2_k, act1, act2, pool1, pool2]
    solution = (8, 16, 32, 16, 0.3, 0.3, 1, 0, 0, 2, 1, 0)
    # -> conv1: 5x5, 8 ch, ReLU, MaxPool ; conv2: 3x3, 16 ch, Tanh, AvgPool
    #    fc1: 8*8*16 -> 32 ; fc2: 32 -> 16 ; fc3: 16 -> 10

    key = jax.random.PRNGKey(0)
    pkey, xkey = jax.random.split(key)
    params = init_params(pkey, solution, num_classes=10)
    prep = prepare_params(params, solution, input_hw=(32, 32))   # one-time packing

    # PyTorch-style NCHW input; 32x32 spatial is required by fc1 in_features = 8*8*C2.
    x = jax.random.normal(xkey, (2, 3, 32, 32), jnp.float32)

    _roll_is_jnp_like()   # resolve the roll sign convention once, outside jit

    fwd = jax.jit(functools.partial(lenet5_forward, solution=solution))
    out = jax.block_until_ready(fwd(prep, x))
    assert out.shape == (2, 10) and out.dtype == jnp.float32
    assert bool(jnp.all(jnp.isfinite(out)))

    ref = lenet5_reference(params, x, solution)
    max_err = float(jnp.max(jnp.abs(out - ref)))
    assert max_err < 0.2, f"kernel/reference mismatch: {max_err}"
    print("KERNEL_OK")
</pallas_src>

<mosaic_0001>
module attributes {stable_mosaic.version = 11 : i64} {
  func.func @k(%arg0: memref<8x128xf32, #tpu.memory_space<vmem>>, %arg1: memref<8x128xf32, #tpu.memory_space<vmem>>) attributes {dimension_semantics = [], scalar_prefetch = 0 : i64, scratch_operands = 0 : i64, tpu.core_type = #tpu.core_type<tc>} {
    %c0 = arith.constant 0 : index
    %c0_0 = arith.constant 0 : index
    %0 = vector.load %arg0[%c0, %c0_0] : memref<8x128xf32, #tpu.memory_space<vmem>>, vector<8x128xf32>
    %c1_i32 = arith.constant 1 : i32
    %1 = tpu.dynamic_rotate %0 by %c1_i32 dim 1 : vector<8x128xf32>, i32 -> vector<8x128xf32>
    %c0_1 = arith.constant 0 : index
    %c0_2 = arith.constant 0 : index
    %2 = vector.load %arg1[%c0_1, %c0_2] : memref<8x128xf32, #tpu.memory_space<vmem>>, vector<8x128xf32>
    tpu.vector_store %arg1[%c0_1, %c0_2], %1 {strides = array<i32>} : memref<8x128xf32, #tpu.memory_space<vmem>>, vector<8x128xf32>,
    return
  }
}

</mosaic_0001>

<llo_original>
// kernel: tpu_custom_call.1
$region0: #{tpu_custom_call.1}
  #allocation0 [shape = 'u32[]', space=smem, size = 0x4, offset = 0x4, fixed_abs, tag = 'smem constant byte address 0x4 - core index']
  #allocation1 [shape = 'u32[72,128]{1,0:T(1,128)}', space=vmem, size = 0x9000, scoped, tag = 'internal scratch']
  %s0 = inlined_call_operand.hbm [shape: f32[8,128], index: 0, kind: input, shape index: {}]
  %s1 = inlined_call_operand.hbm [shape: f32[8,128], index: 1, kind: output, shape index: {}]
  %s2 = sld [smem:[#allocation0]]
  $region18: #{tpu_custom_call.1} parent=0
    _
  %s4 = ssub.s32 1, %s2
  %s5 = scalar_select 0, %s4, %s2
  $region1: #{tpu_custom_call.1} parent=0
    #allocation2 [shape = 'u8[4096]{0}', space=vmem, size = 0x1000, scoped, tag = 'input window, operand 0, single buffered']
    #allocation3 [shape = 's32[1]{0}', space=sflag, size = 0x4, scoped, tag = 'scoped memory for tpu_custom_call.1']
    #allocation4 [shape = 's32[1]{0}', space=sflag, size = 0x4, scoped, tag = 'scoped memory for tpu_custom_call.1']
    #allocation5 [shape = 'u8[4096]{0}', space=vmem, size = 0x1000, scoped, tag = 'output window, operand 0, single buffered']
    %6 = vsyncpa [#allocation3], 0
    %7 = vsyncpa [#allocation4], 0
    // Predicated region
    $region2: #{tpu_custom_call.1} parent=1 // pred_check
      _
    $region3: #{tpu_custom_call.1} parent=1 // pred_check_branch
      %9 = sbr.rel (0) target = $region5
    $region4: #{tpu_custom_call.1} parent=1 // pred_region
      %11 = vsyncadd [#allocation3], 0
      %s13 = sshll.u32 %s0, 4
      %s14 = int_to_ptr.hbm [resolvable:$true] %s13
      %s15 = sshll.u32 [#allocation2], 4
      %s16 = int_to_ptr.vmem [resolvable:$true] %s15
      %18 = dma.hbm_to_vmem [thread:$0]  %s14, 128, %s16, [#allocation3]
    $region5: #{tpu_custom_call.1} parent=1 // pred_fallthru
      _
    // Predicated region
    $region6: #{tpu_custom_call.1} parent=1 // pred_check
      _
    $region7: #{tpu_custom_call.1} parent=1 // pred_check_branch
      %20 = sbr.rel (0) target = $region9
    $region8: #{tpu_custom_call.1} parent=1 // pred_region
      %22 = dma.done [#allocation3], 128
    $region9: #{tpu_custom_call.1} parent=1 // pred_fallthru
      _
    %v23 = vld [vmem:[#allocation2] sm:$0xff]
    %24 = vrot.lane.b32.xlu0 %v23, 1
    %v25 = vpop.permute.xlu0 %24
    %26 = vst [vmem:[#allocation5] sm:$0xff] %v25
    // Predicated region
    $region10: #{tpu_custom_call.1} parent=1 // pred_check
      _
    $region11: #{tpu_custom_call.1} parent=1 // pred_check_branch
      %28 = sbr.rel (0) target = $region13
    $region12: #{tpu_custom_call.1} parent=1 // pred_region
      %30 = vsyncadd [#allocation4], 0
      %s32 = sshll.u32 [#allocation5], 4
      %s33 = int_to_ptr.vmem [resolvable:$true] %s32
      %s34 = sshll.u32 %s1, 4
      %s35 = int_to_ptr.hbm [resolvable:$true] %s34
      %37 = dma.vmem_to_hbm [thread:$0]  %s33, 128, %s35, [#allocation4]
    $region13: #{tpu_custom_call.1} parent=1 // pred_fallthru
      _
    // Predicated region
    $region14: #{tpu_custom_call.1} parent=1 // pred_check
      _
    $region15: #{tpu_custom_call.1} parent=1 // pred_check_branch
      %39 = sbr.rel (0) target = $region17
    $region16: #{tpu_custom_call.1} parent=1 // pred_region
      %41 = dma.done [#allocation4], 128
    $region17: #{tpu_custom_call.1} parent=1 // pred_fallthru
      _
    %42 = vsyncpa [#allocation3], 1
    %43 = vsyncpa [#allocation4], 1

</llo_original>
